<compile_context>
chip_gen: v6e
topology: v6e:2x2x1
jax: 0.10.0
libtpu: 0.0.40
codegen_flags: <defaults>
</compile_context>

<pallas_src>
from typing import NamedTuple

import jax
import jax.numpy as jnp
from jax.experimental import pallas as pl
from jax.experimental.pallas import tpu as pltpu  # noqa: F401  (TPU backend target)

_LANES = 128      # TPU vreg lane width
_SUBLANES = 8     # f32 sublane tile


class QnetParams(NamedTuple):
    """Kernel-layout parameters (prepared ONCE, never per call).

    w1: (S, H)       fc1 weight, transposed to (in, out)
    b1: (1, H)       fc1 bias, f32
    w2: (H, A_pad)   fc2 weight, (in, out), lane-padded to a multiple of 128
    b2: (1, A_pad)   fc2 bias, f32, lane-padded (padding columns are zero)
    """
    w1: jax.Array
    b1: jax.Array
    w2: jax.Array
    b2: jax.Array


def params_from_torch_layout(w1, b1, w2, b2, param_dtype=jnp.float32):
    """One-time conversion from PyTorch nn.Linear layout to kernel layout.

    Call this once at init / after loading a checkpoint — NOT inside the
    per-step forward path (the transposes/pads are separate XLA copies).
    Set param_dtype=jnp.bfloat16 on v6e/v7x to halve weight DMA traffic.
    """
    H, S = w1.shape
    A = w2.shape[0]
    a_pad = ((A + _LANES - 1) // _LANES) * _LANES
    w1_t = jnp.transpose(w1).astype(param_dtype)                         # (S, H)
    w2_t = jnp.zeros((H, a_pad), param_dtype).at[:, :A].set(
        jnp.transpose(w2).astype(param_dtype))                           # (H, A_pad)
    b1_r = b1.reshape(1, H).astype(jnp.float32)                          # (1, H)
    b2_r = jnp.zeros((1, a_pad), jnp.float32).at[:, :A].set(
        b2.astype(jnp.float32))                                          # (1, A_pad)
    return QnetParams(w1_t, b1_r, w2_t, b2_r)


def qnet_kernel(x_ref, w1_ref, b1_ref, w2_ref, b2_ref, out_ref):
    """fc1 -> ReLU -> fc2, entirely resident in VMEM in a single grid step."""
    w1 = w1_ref[...]                                     # (S, H)
    w2 = w2_ref[...]                                     # (H, A_pad)
    x = x_ref[...].astype(w1.dtype)                      # MXU consumes weight dtype

    # fc1 + bias + ReLU; accumulate and do element-wise math in f32 (v5e-safe).
    h = jnp.dot(x, w1, preferred_element_type=jnp.float32)        # (B, H) f32
    h = jnp.maximum(h + b1_ref[...], 0.0)

    # fc2 — lane-dense output (A padded to 128) -> unmasked vector stores.
    o = jnp.dot(h.astype(w2.dtype), w2, preferred_element_type=jnp.float32)
    out_ref[...] = (o + b2_ref[...]).astype(out_ref.dtype)


def _full_spec(shape):
    return pl.BlockSpec(shape, lambda: (0,) * len(shape))


def qnet_forward(x, params: QnetParams, no_actions: int):
    """x: (B, S) f32. Returns Q-values (B, no_actions) f32 (same as PyTorch forward)."""
    B, S = x.shape
    H = params.w1.shape[1]
    a_pad = params.w2.shape[1]
    f32_bytes = 4
    w_bytes = jnp.dtype(params.w1.dtype).itemsize

    # Pad the batch to a sublane multiple only when necessary.
    b_pad = ((B + _SUBLANES - 1) // _SUBLANES) * _SUBLANES
    x_in = x if b_pad == B else jnp.pad(x, ((0, b_pad - B), (0, 0)))

    cost = pl.CostEstimate(
        flops=2 * b_pad * S * H + 2 * b_pad * H * a_pad,
        transcendentals=0,
        bytes_accessed=(b_pad * S * f32_bytes
                        + params.w1.size * w_bytes
                        + params.w2.size * w_bytes
                        + params.b1.size * f32_bytes
                        + params.b2.size * f32_bytes
                        + b_pad * a_pad * f32_bytes),
    )

    out = pl.pallas_call(
        qnet_kernel,
        out_shape=jax.ShapeDtypeStruct((b_pad, a_pad), jnp.float32),
        grid=(),
        in_specs=[
            _full_spec((b_pad, S)),
            _full_spec((S, H)),
            _full_spec((1, H)),
            _full_spec((H, a_pad)),
            _full_spec((1, a_pad)),
        ],
        out_specs=_full_spec((b_pad, a_pad)),
        cost_estimate=cost,
    )(x_in, params.w1, params.b1, params.w2, params.b2)

    # Single cheap static slice back to the logical (B, no_actions) shape.
    return out[:B, :no_actions]


# TODO(synk): sample_action's epsilon-greedy coin flip is host-side Python
# randomness; only the forward pass is kernelized (argmax can be fused later).


if __name__ == "__main__":
    # CartPole DQN sizes; batch sized like a replay-buffer minibatch so the
    # fixed pallas_call / DMA cost is amortized (per perf review).
    B, STATE, HIDDEN, ACTIONS = 128, 4, 128, 2

    key = jax.random.PRNGKey(0)
    kx, k1, k2, k3, k4 = jax.random.split(key, 5)
    bound1 = 1.0 / jnp.sqrt(jnp.float32(STATE))
    bound2 = 1.0 / jnp.sqrt(jnp.float32(HIDDEN))
    # PyTorch-layout params (as a checkpoint would provide them).
    w1 = jax.random.uniform(k1, (HIDDEN, STATE), jnp.float32, -bound1, bound1)
    b1 = jax.random.uniform(k2, (HIDDEN,), jnp.float32, -bound1, bound1)
    w2 = jax.random.uniform(k3, (ACTIONS, HIDDEN), jnp.float32, -bound2, bound2)
    b2 = jax.random.uniform(k4, (ACTIONS,), jnp.float32, -bound2, bound2)
    x = jax.random.normal(kx, (B, STATE), jnp.float32)

    # One-time layout conversion (hoisted out of the per-call path).
    params = params_from_torch_layout(w1, b1, w2, b2)

    fwd = jax.jit(qnet_forward, static_argnums=2)
    out = jax.block_until_ready(fwd(x, params, ACTIONS))

    # Pure-JAX reference (same semantics as the PyTorch forward).
    ref = jnp.maximum(x @ w1.T + b1, 0.0) @ w2.T + b2
    assert out.shape == (B, ACTIONS)
    assert jnp.allclose(out, ref, atol=1e-5, rtol=1e-5)

    print("KERNEL_OK")
</pallas_src>

<mosaic_0001>
module attributes {stable_mosaic.version = 11 : i64} {
  func.func @qnet_kernel(%arg0: memref<128x4xf32, #tpu.memory_space<vmem>>, %arg1: memref<4x128xf32, #tpu.memory_space<vmem>>, %arg2: memref<1x128xf32, #tpu.memory_space<vmem>>, %arg3: memref<128x128xf32, #tpu.memory_space<vmem>>, %arg4: memref<1x128xf32, #tpu.memory_space<vmem>>, %arg5: memref<128x128xf32, #tpu.memory_space<vmem>>) attributes {dimension_semantics = [], scalar_prefetch = 0 : i64, scratch_operands = 0 : i64, tpu.core_type = #tpu.core_type<tc>} {
    %c0 = arith.constant 0 : index
    %c0_0 = arith.constant 0 : index
    %0 = vector.load %arg1[%c0, %c0_0] : memref<4x128xf32, #tpu.memory_space<vmem>>, vector<4x128xf32>
    %c0_1 = arith.constant 0 : index
    %c0_2 = arith.constant 0 : index
    %1 = vector.load %arg3[%c0_1, %c0_2] : memref<128x128xf32, #tpu.memory_space<vmem>>, vector<128x128xf32>
    %c0_3 = arith.constant 0 : index
    %c0_4 = arith.constant 0 : index
    %2 = vector.load %arg0[%c0_3, %c0_4] : memref<128x4xf32, #tpu.memory_space<vmem>>, vector<128x4xf32>
    %cst = arith.constant dense<0.000000e+00> : vector<128x128xf32>
    %3 = tpu.matmul %2, %0, %cst {dimension_numbers = #tpu.dot_dimension_numbers<[1], [0], [0], [1], [0, 0, 1, 1], [], []>} : vector<128x4xf32>, vector<4x128xf32>, vector<128x128xf32> -> vector<128x128xf32>
    %c0_5 = arith.constant 0 : index
    %c0_6 = arith.constant 0 : index
    %4 = vector.load %arg2[%c0_5, %c0_6] : memref<1x128xf32, #tpu.memory_space<vmem>>, vector<1x128xf32>
    %5 = vector.broadcast %4 : vector<1x128xf32> to vector<128x128xf32>
    %6 = arith.addf %3, %5 : vector<128x128xf32>
    %cst_7 = arith.constant 0.000000e+00 : f32
    %7 = vector.broadcast %cst_7 : f32 to vector<128x128xf32>
    %8 = arith.maximumf %6, %7 : vector<128x128xf32>
    %cst_8 = arith.constant dense<0.000000e+00> : vector<128x128xf32>
    %9 = tpu.matmul %8, %1, %cst_8 {dimension_numbers = #tpu.dot_dimension_numbers<[1], [0], [0], [1], [0, 0, 1, 1], [], []>} : vector<128x128xf32>, vector<128x128xf32>, vector<128x128xf32> -> vector<128x128xf32>
    %c0_9 = arith.constant 0 : index
    %c0_10 = arith.constant 0 : index
    %10 = vector.load %arg4[%c0_9, %c0_10] : memref<1x128xf32, #tpu.memory_space<vmem>>, vector<1x128xf32>
    %11 = vector.broadcast %10 : vector<1x128xf32> to vector<128x128xf32>
    %12 = arith.addf %9, %11 : vector<128x128xf32>
    %c0_11 = arith.constant 0 : index
    %c0_12 = arith.constant 0 : index
    %13 = vector.load %arg5[%c0_11, %c0_12] : memref<128x128xf32, #tpu.memory_space<vmem>>, vector<128x128xf32>
    tpu.vector_store %arg5[%c0_11, %c0_12], %12 {strides = array<i32>} : memref<128x128xf32, #tpu.memory_space<vmem>>, vector<128x128xf32>,
    return
  }
}

</mosaic_0001>

<llo_original>
// kernel: qnet_forward.1
$region0: #{qnet_forward.1}
  #allocation0 [shape = 'u32[]', space=smem, size = 0x4, offset = 0x4, fixed_abs, tag = 'smem constant byte address 0x4 - core index']
  #allocation1 [shape = 'u32[144,128]{1,0:T(1,128)}', space=vmem, size = 0x12000, scoped, tag = 'internal scratch']
  %s0 = inlined_call_operand.vmem [shape: f32[128,4], index: 0, kind: input, shape index: {}]
  %s1 = inlined_call_operand.vmem [shape: f32[4,128], index: 1, kind: input, shape index: {}]
  %s2 = inlined_call_operand.vmem [shape: f32[1,128], index: 2, kind: input, shape index: {}]
  %s3 = inlined_call_operand.vmem [shape: f32[128,128], index: 3, kind: input, shape index: {}]
  %s4 = inlined_call_operand.vmem [shape: f32[1,128], index: 4, kind: input, shape index: {}]
  %s5 = inlined_call_operand.vmem [shape: f32[128,128], index: 5, kind: output, shape index: {}]
  %s6 = sld [smem:[#allocation0]]
  $region30: #{qnet_forward.1} parent=0
    _
  %s8 = ssub.s32 1, %s6
  %s9 = scalar_select 0, %s8, %s6
  // Predicated region
  $region2: #{qnet_forward.1} parent=0 // pred_check
    _
  $region3: #{qnet_forward.1} parent=0 // pred_check_branch
    %11 = sbr.rel (0) target = $region5
  $region4: #{qnet_forward.1} parent=0 // pred_region
    _
  $region5: #{qnet_forward.1} parent=0 // pred_fallthru
    _
  // Predicated region
  $region6: #{qnet_forward.1} parent=0 // pred_check
    _
  $region7: #{qnet_forward.1} parent=0 // pred_check_branch
    %13 = sbr.rel (0) target = $region9
  $region8: #{qnet_forward.1} parent=0 // pred_region
    _
  $region9: #{qnet_forward.1} parent=0 // pred_fallthru
    _
  // Predicated region
  $region10: #{qnet_forward.1} parent=0 // pred_check
    _
  $region11: #{qnet_forward.1} parent=0 // pred_check_branch
    %15 = sbr.rel (0) target = $region13
  $region12: #{qnet_forward.1} parent=0 // pred_region
    _
  $region13: #{qnet_forward.1} parent=0 // pred_fallthru
    _
  // Predicated region
  $region14: #{qnet_forward.1} parent=0 // pred_check
    _
  $region15: #{qnet_forward.1} parent=0 // pred_check_branch
    %17 = sbr.rel (0) target = $region17
  $region16: #{qnet_forward.1} parent=0 // pred_region
    _
  $region17: #{qnet_forward.1} parent=0 // pred_fallthru
    _
  // Predicated region
  $region18: #{qnet_forward.1} parent=0 // pred_check
    _
  $region19: #{qnet_forward.1} parent=0 // pred_check_branch
    %19 = sbr.rel (0) target = $region21
  $region20: #{qnet_forward.1} parent=0 // pred_region
    _
  $region21: #{qnet_forward.1} parent=0 // pred_fallthru
    _
  %v20 = vld [vmem:[%s1] sm:$0xf]
  %v21 = vld [vmem:[%s3] sm:$0xff]
  %v22 = vld [vmem:[%s3 + $0x8] sm:$0xff]
  %v23 = vld [vmem:[%s3 + $0x10] sm:$0xff]
  %v24 = vld [vmem:[%s3 + $0x18] sm:$0xff]
  %v25 = vld [vmem:[%s3 + $0x20] sm:$0xff]
  %v26 = vld [vmem:[%s3 + $0x28] sm:$0xff]
  %v27 = vld [vmem:[%s3 + $0x30] sm:$0xff]
  %v28 = vld [vmem:[%s3 + $0x38] sm:$0xff]
  %v29 = vld [vmem:[%s3 + $0x40] sm:$0xff]
  %v30 = vld [vmem:[%s3 + $0x48] sm:$0xff]
  %v31 = vld [vmem:[%s3 + $0x50] sm:$0xff]
  %v32 = vld [vmem:[%s3 + $0x58] sm:$0xff]
  %v33 = vld [vmem:[%s3 + $0x60] sm:$0xff]
  %v34 = vld [vmem:[%s3 + $0x68] sm:$0xff]
  %v35 = vld [vmem:[%s3 + $0x70] sm:$0xff]
  %v36 = vld [vmem:[%s3 + $0x78] sm:$0xff]
  %v37 = vld [vmem:[%s0] sm:$0xff]
  %v38 = vld [vmem:[%s0 + $0x8] sm:$0xff]
  %v39 = vld [vmem:[%s0 + $0x10] sm:$0xff]
  %v40 = vld [vmem:[%s0 + $0x18] sm:$0xff]
  %v41 = vld [vmem:[%s0 + $0x20] sm:$0xff]
  %v42 = vld [vmem:[%s0 + $0x28] sm:$0xff]
  %v43 = vld [vmem:[%s0 + $0x30] sm:$0xff]
  %v44 = vld [vmem:[%s0 + $0x38] sm:$0xff]
  %v45 = vld [vmem:[%s0 + $0x40] sm:$0xff]
  %v46 = vld [vmem:[%s0 + $0x48] sm:$0xff]
  %v47 = vld [vmem:[%s0 + $0x50] sm:$0xff]
  %v48 = vld [vmem:[%s0 + $0x58] sm:$0xff]
  %v49 = vld [vmem:[%s0 + $0x60] sm:$0xff]
  %v50 = vld [vmem:[%s0 + $0x68] sm:$0xff]
  %v51 = vld [vmem:[%s0 + $0x70] sm:$0xff]
  %v52 = vld [vmem:[%s0 + $0x78] sm:$0xff]
  %v53 = vld [vmem:[%s2] sm:$0x1]
  %v55 = vlaneseq
  %v56 = vshrl.u32 %v55, 7
  %v57 = vsub.s32 0, %v56
  %v58 = vrot.slane %v53, %v57
  %vm60 = vcmask 31744
  %v62 = vsel %vm60, %v37, 0
  %v65 = vsel %vm60, %v38, 0
  %v68 = vsel %vm60, %v39, 0
  %v71 = vsel %vm60, %v40, 0
  %v74 = vsel %vm60, %v41, 0
  %v77 = vsel %vm60, %v42, 0
  %v80 = vsel %vm60, %v43, 0
  %v83 = vsel %vm60, %v44, 0
  %v86 = vsel %vm60, %v45, 0
  %v89 = vsel %vm60, %v46, 0
  %v92 = vsel %vm60, %v47, 0
  %v95 = vsel %vm60, %v48, 0
  %v98 = vsel %vm60, %v49, 0
  %v101 = vsel %vm60, %v50, 0
  %v104 = vsel %vm60, %v51, 0
  %v107 = vsel %vm60, %v52, 0
  %vm109 = vcmask 1043456
  %v111 = vsel %vm109, %v20, 0
  %113 = vmatprep.subr.mxu0 0.0
  %114 = vmatpush1.msra.mxu0 0.0
  %115 = vmatprep.subr.mxu0 0.0
  %116 = vmatpush1.msra.mxu0 0.0
  %117 = vmatprep.subr.mxu0 0.0
  %118 = vmatpush1.msra.mxu0 0.0
  %119 = vmatprep.subr.mxu0 0.0
  %120 = vmatpush1.msra.mxu0 0.0
  %121 = vmatprep.subr.mxu0 0.0
  %122 = vmatpush1.msra.mxu0 0.0
  %123 = vmatprep.subr.mxu0 0.0
  %124 = vmatpush1.msra.mxu0 0.0
  %125 = vmatprep.subr.mxu0 0.0
  %126 = vmatpush1.msra.mxu0 0.0
  %127 = vmatprep.subr.mxu0 0.0
  %128 = vmatpush1.msra.mxu0 0.0
  %129 = vmatprep.subr.mxu0 0.0
  %130 = vmatpush1.msra.mxu0 0.0
  %131 = vmatprep.subr.mxu0 0.0
  %132 = vmatpush1.msra.mxu0 0.0
  %133 = vmatprep.subr.mxu0 0.0
  %134 = vmatpush1.msra.mxu0 0.0
  %135 = vmatprep.subr.mxu0 0.0
  %136 = vmatpush1.msra.mxu0 0.0
  %137 = vmatprep.subr.mxu0 0.0
  %138 = vmatpush1.msra.mxu0 0.0
  %139 = vmatprep.subr.mxu0 0.0
  %140 = vmatpush1.msra.mxu0 0.0
  %141 = vmatprep.subr.mxu0 0.0
  %142 = vmatpush1.msra.mxu0 0.0
  %143 = vmatprep.subr.mxu0 0.0
  %144 = vmatpush1.msra.mxu0 %v111
  %145 = vmatprep.subr.mxu0 0.0
  %146 = vmatpush2.msra.mxu0 0.0
  %147 = vmatprep.subr.mxu0 0.0
  %148 = vmatpush2.msra.mxu0 0.0
  %149 = vmatprep.subr.mxu0 0.0
  %150 = vmatpush2.msra.mxu0 0.0
  %151 = vmatprep.subr.mxu0 0.0
  %152 = vmatpush2.msra.mxu0 0.0
  %153 = vmatprep.subr.mxu0 0.0
  %154 = vmatpush2.msra.mxu0 0.0
  %155 = vmatprep.subr.mxu0 0.0
  %156 = vmatpush2.msra.mxu0 0.0
  %157 = vmatprep.subr.mxu0 0.0
  %158 = vmatpush2.msra.mxu0 0.0
  %159 = vmatprep.subr.mxu0 0.0
  %160 = vmatpush2.msra.mxu0 0.0
  %161 = vmatprep.subr.mxu0 0.0
  %162 = vmatpush2.msra.mxu0 0.0
  %163 = vmatprep.subr.mxu0 0.0
  %164 = vmatpush2.msra.mxu0 0.0
  %165 = vmatprep.subr.mxu0 0.0
  %166 = vmatpush2.msra.mxu0 0.0
  %167 = vmatprep.subr.mxu0 0.0
  %168 = vmatpush2.msra.mxu0 0.0
  %169 = vmatprep.subr.mxu0 0.0
  %170 = vmatpush2.msra.mxu0 0.0
  %171 = vmatprep.subr.mxu0 0.0
  %172 = vmatpush2.msra.mxu0 0.0
  %173 = vmatprep.subr.mxu0 0.0
  %174 = vmatpush2.msra.mxu0 0.0
  %175 = vmatprep.subr.mxu0 0.0
  %176 = vmatpush2.msra.mxu0 0.0
  %177 = vmatprep.mubr.f32.mxu0 0.0
  %178 = vmatmul.mubr.f32.gmra.mxu0 %v62
  %v179 = vpop.f32.mrf.mxu0
  %v180 = vadd.f32 %v58, %v179
  %v181 = vpop.f32.mrf.mxu0
  %182 = vmatprep.mubr.f32.mxu0 0.0
  %183 = vmatmul.mubr.f32.gmra.mxu0 %v65
  %v184 = vpop.f32.mrf.mxu0
  %v185 = vadd.f32 %v58, %v184
  %v186 = vpop.f32.mrf.mxu0
  %187 = vmatprep.mubr.f32.mxu0 0.0
  %188 = vmatmul.mubr.f32.gmra.mxu0 %v68
  %v189 = vpop.f32.mrf.mxu0
  %v190 = vadd.f32 %v58, %v189
  %v191 = vpop.f32.mrf.mxu0
  %192 = vmatprep.mubr.f32.mxu0 0.0
  %193 = vmatmul.mubr.f32.gmra.mxu0 %v71
  %v194 = vpop.f32.mrf.mxu0
  %v195 = vadd.f32 %v58, %v194
  %v196 = vpop.f32.mrf.mxu0
  %197 = vmatprep.mubr.f32.mxu0 0.0
  %198 = vmatmul.mubr.f32.gmra.mxu0 %v74
  %v199 = vpop.f32.mrf.mxu0
  %v200 = vadd.f32 %v58, %v199
  %v201 = vpop.f32.mrf.mxu0
  %202 = vmatprep.mubr.f32.mxu0 0.0
  %203 = vmatmul.mubr.f32.gmra.mxu0 %v77
  %v204 = vpop.f32.mrf.mxu0
  %v205 = vadd.f32 %v58, %v204
  %v206 = vpop.f32.mrf.mxu0
  %207 = vmatprep.mubr.f32.mxu0 0.0
  %208 = vmatmul.mubr.f32.gmra.mxu0 %v80
  %v209 = vpop.f32.mrf.mxu0
  %v210 = vadd.f32 %v58, %v209
  %v211 = vpop.f32.mrf.mxu0
  %212 = vmatprep.mubr.f32.mxu0 0.0
  %213 = vmatmul.mubr.f32.gmra.mxu0 %v83
  %v214 = vpop.f32.mrf.mxu0
  %v215 = vadd.f32 %v58, %v214
  %v216 = vpop.f32.mrf.mxu0
  %217 = vmatprep.mubr.f32.mxu0 0.0
  %218 = vmatmul.mubr.f32.gmra.mxu0 %v86
  %v219 = vpop.f32.mrf.mxu0
  %v220 = vadd.f32 %v58, %v219
  %v221 = vpop.f32.mrf.mxu0
  %222 = vmatprep.mubr.f32.mxu0 0.0
  %223 = vmatmul.mubr.f32.gmra.mxu0 %v89
  %v224 = vpop.f32.mrf.mxu0
  %v225 = vadd.f32 %v58, %v224
  %v226 = vpop.f32.mrf.mxu0
  %227 = vmatprep.mubr.f32.mxu0 0.0
  %228 = vmatmul.mubr.f32.gmra.mxu0 %v92
  %v229 = vpop.f32.mrf.mxu0
  %v230 = vadd.f32 %v58, %v229
  %v231 = vpop.f32.mrf.mxu0
  %232 = vmatprep.mubr.f32.mxu0 0.0
  %233 = vmatmul.mubr.f32.gmra.mxu0 %v95
  %v234 = vpop.f32.mrf.mxu0
  %v235 = vadd.f32 %v58, %v234
  %v236 = vpop.f32.mrf.mxu0
  %237 = vmatprep.mubr.f32.mxu0 0.0
  %238 = vmatmul.mubr.f32.gmra.mxu0 %v98
  %v239 = vpop.f32.mrf.mxu0
  %v240 = vadd.f32 %v58, %v239
  %v241 = vpop.f32.mrf.mxu0
  %242 = vmatprep.mubr.f32.mxu0 0.0
  %243 = vmatmul.mubr.f32.gmra.mxu0 %v101
  %v244 = vpop.f32.mrf.mxu0
  %v245 = vadd.f32 %v58, %v244
  %v246 = vpop.f32.mrf.mxu0
  %247 = vmatprep.mubr.f32.mxu0 0.0
  %248 = vmatmul.mubr.f32.gmra.mxu0 %v104
  %v249 = vpop.f32.mrf.mxu0
  %v250 = vadd.f32 %v58, %v249
  %v251 = vpop.f32.mrf.mxu0
  %252 = vmatprep.mubr.f32.mxu0 0.0
  %253 = vmatmul.mubr.f32.gmra.mxu0 %v107
  %v254 = vpop.f32.mrf.mxu0
  %v255 = vadd.f32 %v58, %v254
  %v256 = vpop.f32.mrf.mxu0
  %257 = vdwg.mxu0
  %v258 = vmax.f32 %v180, 0.0
  %v259 = vmax.f32 %v185, 0.0
  %v260 = vmax.f32 %v190, 0.0
  %v261 = vmax.f32 %v195, 0.0
  %v262 = vmax.f32 %v200, 0.0
  %v263 = vmax.f32 %v205, 0.0
  %v264 = vmax.f32 %v210, 0.0
  %v265 = vmax.f32 %v215, 0.0
  %v266 = vmax.f32 %v220, 0.0
  %v267 = vmax.f32 %v225, 0.0
  %v268 = vmax.f32 %v230, 0.0
  %v269 = vmax.f32 %v235, 0.0
  %v270 = vmax.f32 %v240, 0.0
  %v271 = vmax.f32 %v245, 0.0
  %v272 = vmax.f32 %v250, 0.0
  %v273 = vmax.f32 %v255, 0.0
  %v274 = vld [vmem:[%s4] sm:$0x1]
  %v276 = vlaneseq
  %v277 = vshrl.u32 %v276, 7
  %v278 = vsub.s32 0, %v277
  %v279 = vrot.slane %v274, %v278
  %281 = vmatprep.subr.mxu0 0.0
  %282 = vmatpush1.msra.mxu0 %v36
  %283 = vmatprep.subr.mxu0 0.0
  %284 = vmatpush1.msra.mxu0 %v35
  %285 = vmatprep.subr.mxu0 0.0
  %286 = vmatpush1.msra.mxu0 %v34
  %287 = vmatprep.subr.mxu0 0.0
  %288 = vmatpush1.msra.mxu0 %v33
  %289 = vmatprep.subr.mxu0 0.0
  %290 = vmatpush1.msra.mxu0 %v32
  %291 = vmatprep.subr.mxu0 0.0
  %292 = vmatpush1.msra.mxu0 %v31
  %293 = vmatprep.subr.mxu0 0.0
  %294 = vmatpush1.msra.mxu0 %v30
  %295 = vmatprep.subr.mxu0 0.0
  %296 = vmatpush1.msra.mxu0 %v29
  %297 = vmatprep.subr.mxu0 0.0
  %298 = vmatpush1.msra.mxu0 %v28
  %299 = vmatprep.subr.mxu0 0.0
  %300 = vmatpush1.msra.mxu0 %v27
  %301 = vmatprep.subr.mxu0 0.0
  %302 = vmatpush1.msra.mxu0 %v26
  %303 = vmatprep.subr.mxu0 0.0
  %304 = vmatpush1.msra.mxu0 %v25
  %305 = vmatprep.subr.mxu0 0.0
  %306 = vmatpush1.msra.mxu0 %v24
  %307 = vmatprep.subr.mxu0 0.0
  %308 = vmatpush1.msra.mxu0 %v23
  %309 = vmatprep.subr.mxu0 0.0
  %310 = vmatpush1.msra.mxu0 %v22
  %311 = vmatprep.subr.mxu0 0.0
  %312 = vmatpush1.msra.mxu0 %v21
  %313 = vmatprep.subr.mxu0 0.0
  %314 = vmatpush2.msra.mxu0 0.0
  %315 = vmatprep.subr.mxu0 0.0
  %316 = vmatpush2.msra.mxu0 0.0
  %317 = vmatprep.subr.mxu0 0.0
  %318 = vmatpush2.msra.mxu0 0.0
  %319 = vmatprep.subr.mxu0 0.0
  %320 = vmatpush2.msra.mxu0 0.0
  %321 = vmatprep.subr.mxu0 0.0
  %322 = vmatpush2.msra.mxu0 0.0
  %323 = vmatprep.subr.mxu0 0.0
  %324 = vmatpush2.msra.mxu0 0.0
  %325 = vmatprep.subr.mxu0 0.0
  %326 = vmatpush2.msra.mxu0 0.0
  %327 = vmatprep.subr.mxu0 0.0
  %328 = vmatpush2.msra.mxu0 0.0
  %329 = vmatprep.subr.mxu0 0.0
  %330 = vmatpush2.msra.mxu0 0.0
  %331 = vmatprep.subr.mxu0 0.0
  %332 = vmatpush2.msra.mxu0 0.0
  %333 = vmatprep.subr.mxu0 0.0
  %334 = vmatpush2.msra.mxu0 0.0
  %335 = vmatprep.subr.mxu0 0.0
  %336 = vmatpush2.msra.mxu0 0.0
  %337 = vmatprep.subr.mxu0 0.0
  %338 = vmatpush2.msra.mxu0 0.0
  %339 = vmatprep.subr.mxu0 0.0
  %340 = vmatpush2.msra.mxu0 0.0
  %341 = vmatprep.subr.mxu0 0.0
  %342 = vmatpush2.msra.mxu0 0.0
  %343 = vmatprep.subr.mxu0 0.0
  %344 = vmatpush2.msra.mxu0 0.0
  %345 = vmatprep.mubr.f32.mxu0 0.0
  %346 = vmatmul.mubr.f32.gmra.mxu0 %v258
  %v347 = vpop.f32.mrf.mxu0
  %v348 = vadd.f32 %v279, %v347
  %v349 = vpop.f32.mrf.mxu0
  %350 = vmatprep.mubr.f32.mxu0 0.0
  %351 = vmatmul.mubr.f32.gmra.mxu0 %v259
  %v352 = vpop.f32.mrf.mxu0
  %v353 = vadd.f32 %v279, %v352
  %v354 = vpop.f32.mrf.mxu0
  %355 = vmatprep.mubr.f32.mxu0 0.0
  %356 = vmatmul.mubr.f32.gmra.mxu0 %v260
  %v357 = vpop.f32.mrf.mxu0
  %v358 = vadd.f32 %v279, %v357
  %v359 = vpop.f32.mrf.mxu0
  %360 = vmatprep.mubr.f32.mxu0 0.0
  %361 = vmatmul.mubr.f32.gmra.mxu0 %v261
  %v362 = vpop.f32.mrf.mxu0
  %v363 = vadd.f32 %v279, %v362
  %v364 = vpop.f32.mrf.mxu0
  %365 = vmatprep.mubr.f32.mxu0 0.0
  %366 = vmatmul.mubr.f32.gmra.mxu0 %v262
  %v367 = vpop.f32.mrf.mxu0
  %v368 = vadd.f32 %v279, %v367
  %v369 = vpop.f32.mrf.mxu0
  %370 = vmatprep.mubr.f32.mxu0 0.0
  %371 = vmatmul.mubr.f32.gmra.mxu0 %v263
  %v372 = vpop.f32.mrf.mxu0
  %v373 = vadd.f32 %v279, %v372
  %v374 = vpop.f32.mrf.mxu0
  %375 = vmatprep.mubr.f32.mxu0 0.0
  %376 = vmatmul.mubr.f32.gmra.mxu0 %v264
  %v377 = vpop.f32.mrf.mxu0
  %v378 = vadd.f32 %v279, %v377
  %v379 = vpop.f32.mrf.mxu0
  %380 = vmatprep.mubr.f32.mxu0 0.0
  %381 = vmatmul.mubr.f32.gmra.mxu0 %v265
  %v382 = vpop.f32.mrf.mxu0
  %v383 = vadd.f32 %v279, %v382
  %v384 = vpop.f32.mrf.mxu0
  %385 = vmatprep.mubr.f32.mxu0 0.0
  %386 = vmatmul.mubr.f32.gmra.mxu0 %v266
  %v387 = vpop.f32.mrf.mxu0
  %v388 = vadd.f32 %v279, %v387
  %v389 = vpop.f32.mrf.mxu0
  %390 = vmatprep.mubr.f32.mxu0 0.0
  %391 = vmatmul.mubr.f32.gmra.mxu0 %v267
  %v392 = vpop.f32.mrf.mxu0
  %v393 = vadd.f32 %v279, %v392
  %v394 = vpop.f32.mrf.mxu0
  %395 = vmatprep.mubr.f32.mxu0 0.0
  %396 = vmatmul.mubr.f32.gmra.mxu0 %v268
  %v397 = vpop.f32.mrf.mxu0
  %v398 = vadd.f32 %v279, %v397
  %v399 = vpop.f32.mrf.mxu0
  %400 = vmatprep.mubr.f32.mxu0 0.0
  %401 = vmatmul.mubr.f32.gmra.mxu0 %v269
  %v402 = vpop.f32.mrf.mxu0
  %v403 = vadd.f32 %v279, %v402
  %v404 = vpop.f32.mrf.mxu0
  %405 = vmatprep.mubr.f32.mxu0 0.0
  %406 = vmatmul.mubr.f32.gmra.mxu0 %v270
  %v407 = vpop.f32.mrf.mxu0
  %v408 = vadd.f32 %v279, %v407
  %v409 = vpop.f32.mrf.mxu0
  %410 = vmatprep.mubr.f32.mxu0 0.0
  %411 = vmatmul.mubr.f32.gmra.mxu0 %v271
  %v412 = vpop.f32.mrf.mxu0
  %v413 = vadd.f32 %v279, %v412
  %v414 = vpop.f32.mrf.mxu0
  %415 = vmatprep.mubr.f32.mxu0 0.0
  %416 = vmatmul.mubr.f32.gmra.mxu0 %v272
  %v417 = vpop.f32.mrf.mxu0
  %v418 = vadd.f32 %v279, %v417
  %v419 = vpop.f32.mrf.mxu0
  %420 = vmatprep.mubr.f32.mxu0 0.0
  %421 = vmatmul.mubr.f32.gmra.mxu0 %v273
  %v422 = vpop.f32.mrf.mxu0
  %v423 = vadd.f32 %v279, %v422
  %v424 = vpop.f32.mrf.mxu0
  %425 = vdwg.mxu0
  %426 = vst [vmem:[%s5] sm:$0xff] %v348
  %427 = vst [vmem:[%s5 + $0x8] sm:$0xff] %v353
  %428 = vst [vmem:[%s5 + $0x10] sm:$0xff] %v358
  %429 = vst [vmem:[%s5 + $0x18] sm:$0xff] %v363
  %430 = vst [vmem:[%s5 + $0x20] sm:$0xff] %v368
  %431 = vst [vmem:[%s5 + $0x28] sm:$0xff] %v373
  %432 = vst [vmem:[%s5 + $0x30] sm:$0xff] %v378
  %433 = vst [vmem:[%s5 + $0x38] sm:$0xff] %v383
  %434 = vst [vmem:[%s5 + $0x40] sm:$0xff] %v388
  %435 = vst [vmem:[%s5 + $0x48] sm:$0xff] %v393
  %436 = vst [vmem:[%s5 + $0x50] sm:$0xff] %v398
  %437 = vst [vmem:[%s5 + $0x58] sm:$0xff] %v403
  %438 = vst [vmem:[%s5 + $0x60] sm:$0xff] %v408
  %439 = vst [vmem:[%s5 + $0x68] sm:$0xff] %v413
  %440 = vst [vmem:[%s5 + $0x70] sm:$0xff] %v418
  %441 = vst [vmem:[%s5 + $0x78] sm:$0xff] %v423
  // Predicated region
  $region22: #{qnet_forward.1} parent=0 // pred_check
    _
  $region23: #{qnet_forward.1} parent=0 // pred_check_branch
    %443 = sbr.rel (0) target = $region25
  $region24: #{qnet_forward.1} parent=0 // pred_region
    _
  $region25: #{qnet_forward.1} parent=0 // pred_fallthru
    _
  // Predicated region
  $region26: #{qnet_forward.1} parent=0 // pred_check
    _
  $region27: #{qnet_forward.1} parent=0 // pred_check_branch
    %445 = sbr.rel (0) target = $region29
  $region28: #{qnet_forward.1} parent=0 // pred_region
    _
  $region29: #{qnet_forward.1} parent=0 // pred_fallthru
    _

</llo_original>
